<compile_context>
chip_gen: v5e
topology: v5e:2x2
jax: 0.10.0
libtpu: 0.0.40
codegen_flags: <defaults>
</compile_context>

<pallas_src>
import math

import numpy as np
import jax
import jax.numpy as jnp
from jax.experimental import pallas as pl
from jax.experimental.pallas import tpu as pltpu

LANCZOS_A = 3.0


# ----------------------------------------------------------------------------
# Host-side construction of the separable Lanczos resampling matrices.
# ----------------------------------------------------------------------------
def _lanczos_window(x: np.ndarray) -> np.ndarray:
    x = np.asarray(x, np.float64)
    w = np.sinc(x) * np.sinc(x / LANCZOS_A)
    return np.where(np.abs(x) >= LANCZOS_A, 0.0, w)


def _resize_matrix(in_size: int, out_size: int) -> np.ndarray:
    """(out_size, in_size) separable Lanczos resampling matrix (PIL-style)."""
    scale = in_size / out_size
    filterscale = max(scale, 1.0)
    support = LANCZOS_A * filterscale
    mat = np.zeros((out_size, in_size), np.float32)
    for i in range(out_size):
        center = (i + 0.5) * scale
        xmin = max(int(math.floor(center - support)), 0)
        xmax = min(int(math.ceil(center + support)), in_size)
        xs = np.arange(xmin, xmax, dtype=np.float64)
        w = _lanczos_window((xs + 0.5 - center) / filterscale)
        s = w.sum()
        if s != 0.0:
            w = w / s
        mat[i, xmin:xmax] = w.astype(np.float32)
    return mat


def _vmem_capacity_bytes() -> int:
    try:
        return int(pltpu.get_tpu_info().vmem_capacity_bytes)
    except Exception:
        return 64 << 20  # conservative: v7x per-TC VMEM


# ----------------------------------------------------------------------------
# Pallas kernels
# ----------------------------------------------------------------------------
def _pad_mask(pad_box):
    """Boolean 'inside the resized window' mask from trace-time constants."""
    tpad, hnew, lpad, wnew, out_h, out_w = pad_box
    rows = jax.lax.broadcasted_iota(jnp.int32, (out_h, out_w), 0)
    cols = jax.lax.broadcasted_iota(jnp.int32, (out_h, out_w), 1)
    return ((rows >= tpad) & (rows < tpad + hnew)
            & (cols >= lpad) & (cols < lpad + wnew))


def _make_single_kernel(rows_first: bool, compute_dtype, pad_val, pad_box):
    """Per-channel, untiled: two MXU matmuls + in-register pad mask."""
    def kernel(wh_ref, wwT_ref, x_ref, o_ref):
        x = x_ref[0]                      # (H, W)
        wh = wh_ref[...]                  # (out_h, H)  zero-extended (pad folded)
        wwT = wwT_ref[...]                # (W, out_w)  pre-transposed, zero-extended
        if rows_first:
            tmp = jnp.dot(wh, x, preferred_element_type=jnp.float32)     # (oh, W)
            if compute_dtype != jnp.float32:
                tmp = tmp.astype(compute_dtype)
            y = jnp.dot(tmp, wwT, preferred_element_type=jnp.float32)    # (oh, ow)
        else:
            tmp = jnp.dot(x, wwT, preferred_element_type=jnp.float32)    # (H, ow)
            if compute_dtype != jnp.float32:
                tmp = tmp.astype(compute_dtype)
            y = jnp.dot(wh, tmp, preferred_element_type=jnp.float32)     # (oh, ow)
        if pad_box is not None:
            y = jnp.where(_pad_mask(pad_box), y, jnp.float32(pad_val))
        o_ref[0] = y.astype(o_ref.dtype)  # single dense full-tile store
    return kernel


def _make_banded_kernel(compute_dtype, pad_val, pad_box):
    """Per-channel, K-banded over input rows: y_c = sum_b wh[:, b] @ (x_c[b] @ wwT)."""
    def kernel(wh_ref, wwT_ref, x_ref, o_ref, acc_ref):
        b = pl.program_id(1)

        @pl.when(b == 0)
        def _():
            acc_ref[...] = jnp.zeros_like(acc_ref)

        x_band = x_ref[0]                 # (band_h, W)
        wh_band = wh_ref[0]               # (out_h, band_h)
        wwT = wwT_ref[...]                # (W, out_w)
        tmp = jnp.dot(x_band, wwT, preferred_element_type=jnp.float32)   # (bh, ow)
        if compute_dtype != jnp.float32:
            tmp = tmp.astype(compute_dtype)
        acc_ref[...] += jnp.dot(wh_band, tmp, preferred_element_type=jnp.float32)

        @pl.when(b == pl.num_programs(1) - 1)
        def _():
            y = acc_ref[...]
            if pad_box is not None:
                y = jnp.where(_pad_mask(pad_box), y, jnp.float32(pad_val))
            o_ref[0] = y.astype(o_ref.dtype)
    return kernel


# ----------------------------------------------------------------------------
# Wrapper (equivalent of Fit.forward for a CHW float tensor image)
# ----------------------------------------------------------------------------
def fit_forward(img: jnp.ndarray,
                bounds,
                grow: bool = True,
                pad: float | None = None,
                *,
                use_bf16: bool = False,
                _force_band_h: int | None = None) -> jnp.ndarray:
    """img: (C, H, W) float array.  bounds: int or (hbound, wbound)."""
    bounds = (bounds, bounds) if isinstance(bounds, int) else tuple(bounds)
    C, himg, wimg = img.shape                   # PIL: img.size == (wimg, himg)
    hbound, wbound = bounds

    # ---- static scale / target-shape logic (matches reference exactly) ----
    hscale = hbound / himg
    wscale = wbound / wimg
    if not grow:
        hscale = min(hscale, 1.0)
        wscale = min(wscale, 1.0)
    scale = min(hscale, wscale)
    if scale == 1.0:
        # Reference Fit returns the image untouched (and unpadded) here.
        return img

    hnew = min(round(himg * scale), hbound)     # Python round(), like reference
    wnew = min(round(wimg * scale), wbound)

    wh = _resize_matrix(himg, hnew)             # (hnew, H)
    ww = _resize_matrix(wimg, wnew)             # (wnew, W)

    if pad is None:
        out_h, out_w = hnew, wnew
        tpad = lpad = 0
        pad_val = None
    else:
        out_h, out_w = hbound, wbound
        tpad = (hbound - hnew) // 2
        lpad = (wbound - wnew) // 2
        pad_val = float(pad)

    # Zero-extended weights: pad offsets folded into the matrices, so resized
    # pixels land directly inside the padded output tile (zeros elsewhere).
    wh_eff = np.zeros((out_h, himg), np.float32)
    wh_eff[tpad:tpad + hnew, :] = wh
    wwT_eff = np.zeros((wimg, out_w), np.float32)        # pre-transposed (W, out_w)
    wwT_eff[:, lpad:lpad + wnew] = ww.T

    need_mask = (pad_val is not None) and (hnew < out_h or wnew < out_w)
    pad_box = (tpad, hnew, lpad, wnew, out_h, out_w) if need_mask else None
    pad_arg = pad_val if need_mask else None

    compute_dtype = jnp.bfloat16 if use_bf16 else jnp.float32
    w_itemsize = np.dtype(compute_dtype).itemsize
    in_itemsize = w_itemsize
    out_itemsize = np.dtype(img.dtype).itemsize

    x = img.astype(compute_dtype)                        # (C, H, W)
    wwT_j = jnp.asarray(wwT_eff).astype(compute_dtype)

    # ---- per-channel matmul-order selection (no kron bias) ----
    flops_rows_first = out_h * himg * wimg + out_h * wimg * out_w
    flops_cols_first = himg * wimg * out_w + out_h * himg * out_w
    if flops_rows_first != flops_cols_first:
        rows_first = flops_rows_first < flops_cols_first
    else:
        rows_first = (out_h * wimg) <= (himg * out_w)    # smaller intermediate

    # ---- generation-aware VMEM budgeting & band-tiling decision ----
    vmem_cap = _vmem_capacity_bytes()
    vmem_budget = int(0.70 * vmem_cap)                   # headroom for Mosaic scratch

    def _untiled_need(rf):
        tmp_elems = out_h * wimg if rf else himg * out_w
        return (2 * (himg * wimg * in_itemsize            # x block (double-buffered)
                     + out_h * out_w * out_itemsize        # out block
                     + out_h * himg * w_itemsize           # wh
                     + wimg * out_w * w_itemsize)          # wwT
                + 4 * (tmp_elems + out_h * out_w))         # f32 working values

    def _banded_need(bh):
        return (2 * (bh * wimg * in_itemsize
                     + out_h * bh * w_itemsize
                     + out_h * out_w * out_itemsize
                     + wimg * out_w * w_itemsize)
                + 4 * out_h * out_w                         # f32 accumulator
                + 4 * (bh * out_w + out_h * out_w))         # f32 working values

    band_h = None
    if _force_band_h is not None:
        assert himg % _force_band_h == 0 and _force_band_h % 8 == 0
        band_h = int(_force_band_h)
    elif _untiled_need(rows_first) > vmem_budget and himg % 8 == 0:
        for cand in range(himg, 7, -8):                    # largest divisor that fits
            if himg % cand:
                continue
            if _banded_need(cand) <= vmem_budget:
                band_h = cand
                break
    # TODO(synk): if H has no suitable multiple-of-8 divisor (or even band_h=8
    # does not fit VMEM), a host-side zero-pad of H would be needed; we fall
    # back to the untiled path and rely on the compiler in that corner case.

    # ---- build call ----
    if band_h is None:
        wh_in = jnp.asarray(wh_eff).astype(compute_dtype)
        kernel = _make_single_kernel(rows_first, compute_dtype, pad_arg, pad_box)
        grid = (C,)
        in_specs = [
            pl.BlockSpec((out_h, himg), lambda c: (0, 0)),        # wh (resident)
            pl.BlockSpec((wimg, out_w), lambda c: (0, 0)),        # wwT (resident)
            pl.BlockSpec((1, himg, wimg), lambda c: (c, 0, 0)),   # x, per channel
        ]
        out_specs = pl.BlockSpec((1, out_h, out_w), lambda c: (c, 0, 0))
        scratch_shapes = ()
        dim_sem = ("parallel",)                                    # v7x: 2 TCs
        matmul_flops = 2 * C * min(flops_rows_first, flops_cols_first)
        vmem_need = _untiled_need(rows_first)
    else:
        n_bands = himg // band_h
        wh_bands = np.ascontiguousarray(
            wh_eff.reshape(out_h, n_bands, band_h).transpose(1, 0, 2))
        wh_in = jnp.asarray(wh_bands).astype(compute_dtype)       # (nb, out_h, band_h)
        kernel = _make_banded_kernel(compute_dtype, pad_arg, pad_box)
        grid = (C, n_bands)
        in_specs = [
            pl.BlockSpec((1, out_h, band_h), lambda c, b: (b, 0, 0)),  # wh band
            pl.BlockSpec((wimg, out_w), lambda c, b: (0, 0)),          # wwT (resident)
            pl.BlockSpec((1, band_h, wimg), lambda c, b: (c, b, 0)),   # x row band
        ]
        out_specs = pl.BlockSpec((1, out_h, out_w), lambda c, b: (c, 0, 0))
        scratch_shapes = (pltpu.VMEM((out_h, out_w), jnp.float32),)
        dim_sem = ("parallel", "arbitrary")
        matmul_flops = 2 * C * flops_cols_first
        vmem_need = _banded_need(band_h)

    vmem_limit = int(min(max(vmem_need + (8 << 20), 32 << 20),
                         int(0.85 * vmem_cap)))

    bytes_in = (int(wh_in.size) * w_itemsize
                + int(wwT_j.size) * w_itemsize
                + int(x.size) * in_itemsize)
    bytes_out = C * out_h * out_w * out_itemsize

    out = pl.pallas_call(
        kernel,
        out_shape=jax.ShapeDtypeStruct((C, out_h, out_w), img.dtype),
        grid=grid,
        in_specs=in_specs,
        out_specs=out_specs,
        scratch_shapes=scratch_shapes,
        compiler_params=pltpu.CompilerParams(
            dimension_semantics=dim_sem,
            vmem_limit_bytes=vmem_limit),
        cost_estimate=pl.CostEstimate(
            flops=int(matmul_flops),
            transcendentals=0,
            bytes_accessed=int(bytes_in + bytes_out)),
    )(wh_in, wwT_j, x)

    return out


# ----------------------------------------------------------------------------
# Self-test
# ----------------------------------------------------------------------------
if __name__ == "__main__":
    key = jax.random.PRNGKey(0)
    C, H, W = 4, 16, 16
    img = jax.random.uniform(key, (C, H, W), dtype=jnp.float32)

    bounds = (12, 10)          # (hbound, wbound)
    pad_value = 0.5

    # pure-JAX reference of the same math
    hbound, wbound = bounds
    scale = min(hbound / H, wbound / W)
    hnew = min(round(H * scale), hbound)
    wnew = min(round(W * scale), wbound)
    wh_ref = jnp.asarray(_resize_matrix(H, hnew))
    ww_ref = jnp.asarray(_resize_matrix(W, wnew))
    tpad = (hbound - hnew) // 2
    lpad = (wbound - wnew) // 2
    y = jnp.einsum('oh,chw->cow', wh_ref, img)
    y = jnp.einsum('cow,nw->con', y, ww_ref)
    ref = jnp.full((C, hbound, wbound), pad_value, img.dtype)
    ref = ref.at[:, tpad:tpad + hnew, lpad:lpad + wnew].set(y)

    # padded path (per-channel untiled kernel)
    out = jax.block_until_ready(fit_forward(img, bounds, grow=True, pad=pad_value))
    assert out.shape == (C, hbound, wbound), out.shape
    np.testing.assert_allclose(np.asarray(out), np.asarray(ref), rtol=1e-5, atol=1e-5)

    # no-pad path
    out_nopad = jax.block_until_ready(fit_forward(img, bounds, grow=True, pad=None))
    assert out_nopad.shape == (C, hnew, wnew), out_nopad.shape
    np.testing.assert_allclose(np.asarray(out_nopad), np.asarray(y),
                               rtol=1e-5, atol=1e-5)

    # band-tiled (K-reduction) path, forced at small shape to exercise the
    # accumulator kernel used for large images.
    out_band = jax.block_until_ready(
        fit_forward(img, bounds, grow=True, pad=pad_value, _force_band_h=8))
    np.testing.assert_allclose(np.asarray(out_band), np.asarray(ref),
                               rtol=1e-5, atol=1e-5)

    # opt-in bf16 matmul path (relaxed tolerance)
    out_bf16 = jax.block_until_ready(
        fit_forward(img, bounds, grow=True, pad=pad_value, use_bf16=True))
    np.testing.assert_allclose(np.asarray(out_bf16), np.asarray(ref),
                               rtol=5e-2, atol=5e-2)

    print("KERNEL_OK")
</pallas_src>

<mosaic_0001>
module attributes {stable_mosaic.version = 11 : i64} {
  func.func @kernel(%arg0: i32, %arg1: memref<12x16xf32, #tpu.memory_space<vmem>>, %arg2: memref<16x10xf32, #tpu.memory_space<vmem>>, %arg3: memref<1x16x16xf32, #tpu.memory_space<vmem>>, %arg4: memref<1x12x10xf32, #tpu.memory_space<vmem>>) attributes {dimension_semantics = [#tpu.dimension_semantics<parallel>], iteration_bounds = array<i64: 4>, scalar_prefetch = 0 : i64, scratch_operands = 0 : i64, tpu.core_type = #tpu.core_type<tc>, window_params = [{pipeline_mode = #tpu.pipeline_mode<synchronous>, transform_indices = @transform_0, window_bounds = array<i64: 12, 16>}, {pipeline_mode = #tpu.pipeline_mode<synchronous>, transform_indices = @transform_1, window_bounds = array<i64: 16, 10>}, {transform_indices = @transform_2, window_bounds = array<i64: 1, 16, 16>}, {transform_indices = @transform_3, window_bounds = array<i64: 1, 12, 10>}]} {
    %c0 = arith.constant 0 : index
    %c0_0 = arith.constant 0 : index
    %c0_1 = arith.constant 0 : index
    %0 = vector.load %arg3[%c0, %c0_0, %c0_1] : memref<1x16x16xf32, #tpu.memory_space<vmem>>, vector<1x16x16xf32>
    %1 = vector.shape_cast %0 : vector<1x16x16xf32> to vector<16x16xf32>
    %c0_2 = arith.constant 0 : index
    %c0_3 = arith.constant 0 : index
    %2 = vector.load %arg1[%c0_2, %c0_3] : memref<12x16xf32, #tpu.memory_space<vmem>>, vector<12x16xf32>
    %c0_4 = arith.constant 0 : index
    %c0_5 = arith.constant 0 : index
    %3 = vector.load %arg2[%c0_4, %c0_5] : memref<16x10xf32, #tpu.memory_space<vmem>>, vector<16x10xf32>
    %cst = arith.constant dense<0.000000e+00> : vector<16x10xf32>
    %4 = tpu.matmul %1, %3, %cst {dimension_numbers = #tpu.dot_dimension_numbers<[1], [0], [0], [1], [0, 0, 1, 1], [], []>} : vector<16x16xf32>, vector<16x10xf32>, vector<16x10xf32> -> vector<16x10xf32>
    %cst_6 = arith.constant dense<0.000000e+00> : vector<12x10xf32>
    %5 = tpu.matmul %2, %4, %cst_6 {dimension_numbers = #tpu.dot_dimension_numbers<[1], [0], [0], [1], [0, 0, 1, 1], [], []>} : vector<12x16xf32>, vector<16x10xf32>, vector<12x10xf32> -> vector<12x10xf32>
    %6 = tpu.iota {dimensions = array<i32: 0>} : vector<12x10xi32>
    %7 = tpu.iota {dimensions = array<i32: 1>} : vector<12x10xi32>
    %c1_i32 = arith.constant 1 : i32
    %8 = vector.broadcast %c1_i32 : i32 to vector<12x10xi32>
    %9 = arith.cmpi sge, %6, %8 : vector<12x10xi32>
    %c11_i32 = arith.constant 11 : i32
    %10 = vector.broadcast %c11_i32 : i32 to vector<12x10xi32>
    %11 = arith.cmpi slt, %6, %10 : vector<12x10xi32>
    %12 = arith.andi %9, %11 : vector<12x10xi1>
    %c0_i32 = arith.constant 0 : i32
    %13 = vector.broadcast %c0_i32 : i32 to vector<12x10xi32>
    %14 = arith.cmpi sge, %7, %13 : vector<12x10xi32>
    %15 = arith.andi %12, %14 : vector<12x10xi1>
    %c10_i32 = arith.constant 10 : i32
    %16 = vector.broadcast %c10_i32 : i32 to vector<12x10xi32>
    %17 = arith.cmpi slt, %7, %16 : vector<12x10xi32>
    %18 = arith.andi %15, %17 : vector<12x10xi1>
    %cst_7 = arith.constant 5.000000e-01 : f32
    %19 = vector.broadcast %cst_7 : f32 to vector<12x10xf32>
    %20 = arith.select %18, %5, %19 : vector<12x10xi1>, vector<12x10xf32>
    %c0_8 = arith.constant 0 : index
    %c0_9 = arith.constant 0 : index
    %c0_10 = arith.constant 0 : index
    %21 = vector.load %arg4[%c0_8, %c0_9, %c0_10] : memref<1x12x10xf32, #tpu.memory_space<vmem>>, vector<1x12x10xf32>
    %22 = vector.shape_cast %21 : vector<1x12x10xf32> to vector<12x10xf32>
    %23 = vector.shape_cast %20 : vector<12x10xf32> to vector<1x12x10xf32>
    tpu.vector_store %arg4[%c0_8, %c0_9, %c0_10], %23 {strides = array<i32>} : memref<1x12x10xf32, #tpu.memory_space<vmem>>, vector<1x12x10xf32>,
    return
  }
  func.func @transform_0(%arg0: i32) -> (i32, i32) {
    %c0_i32 = arith.constant 0 : i32
    %c0_i32_0 = arith.constant 0 : i32
    %c0_i32_1 = arith.constant 0 : i32
    return %c0_i32, %c0_i32_0 : i32, i32
  }
  func.func @transform_1(%arg0: i32) -> (i32, i32) {
    %c0_i32 = arith.constant 0 : i32
    %c0_i32_0 = arith.constant 0 : i32
    %c0_i32_1 = arith.constant 0 : i32
    return %c0_i32, %c0_i32_0 : i32, i32
  }
  func.func @transform_2(%arg0: i32) -> (i32, i32, i32) {
    %c0_i32 = arith.constant 0 : i32
    %c0_i32_0 = arith.constant 0 : i32
    %c0_i32_1 = arith.constant 0 : i32
    return %arg0, %c0_i32, %c0_i32_0 : i32, i32, i32
  }
  func.func @transform_3(%arg0: i32) -> (i32, i32, i32) {
    %c0_i32 = arith.constant 0 : i32
    %c0_i32_0 = arith.constant 0 : i32
    %c0_i32_1 = arith.constant 0 : i32
    return %arg0, %c0_i32, %c0_i32_0 : i32, i32, i32
  }
}

</mosaic_0001>

<llo_original>
// kernel: tpu_custom_call.1
$region0: #{tpu_custom_call.1}
  #allocation0 [shape = 'u32[]', space=smem, size = 0x4, offset = 0x4, fixed_abs, tag = 'smem constant byte address 0x4 - core index']
  #allocation1 [shape = 'u32[72,128]{1,0:T(1,128)}', space=vmem, size = 0x9000, scoped, tag = 'internal scratch']
  %s0 = inlined_call_operand.hbm [shape: f32[12,16], index: 0, kind: input, shape index: {}]
  %s1 = inlined_call_operand.hbm [shape: f32[16,10], index: 1, kind: input, shape index: {}]
  %s2 = inlined_call_operand.hbm [shape: f32[4,16,16], index: 2, kind: input, shape index: {}]
  %s3 = inlined_call_operand.vmem [shape: f32[4,12,10], index: 3, kind: output, shape index: {}]
  %s4 = sld [smem:[#allocation0]]
  $region57: #{tpu_custom_call.1} parent=0
    _
  %s6 = ssub.s32 1, %s4
  %s7 = scalar_select 0, %s6, %s4
  $region1: #{tpu_custom_call.1} parent=0
    #allocation2 [shape = 'u8[8192]{0}', space=vmem, size = 0x2000, scoped, tag = 'input window, operand 0, single buffered']
    #allocation3 [shape = 's32[2]{0}', space=sflag, size = 0x8, scoped, tag = 'scoped memory for tpu_custom_call.1']
    #allocation4 [shape = 'u8[8192]{0}', space=vmem, size = 0x2000, scoped, tag = 'input window, operand 1, single buffered']
    #allocation5 [shape = 's32[1]{0}', space=sflag, size = 0x4, scoped, tag = 'scoped memory for tpu_custom_call.1']
    #allocation6 [shape = 'u8[16384]{0}', space=vmem, size = 0x4000, scoped, tag = 'input window, operand 2']
    %8 = vsyncpa [#allocation3], 0
    %9 = vsyncpa [#allocation5], 0
    loop: start=0, step=1, limit=6
    $region2: #{tpu_custom_call.1} parent=1 // loop_pre_header
      _
    $region3: #{tpu_custom_call.1} parent=1 // loop_header
      %s11 = sphi 0, %s15
      %p12 = scmp.ge.s32.totalorder %s11, 6
      %s19 = sphi 0, %s19
      %s21 = sphi 0, %s19
      %s22 = sphi 0, %s21
      %s36 = sphi 0, %s22
      %s40 = sphi 0, %s40
      %s42 = sphi 0, %s40
      %s43 = sphi 0, %s42
      %s57 = sphi 0, %s43
      %s63 = sphi 0, %s65
      %s66 = sphi 0, %s63
      %s67 = sphi 0, %s66
      %s83 = sphi 0, %s67
      %s89 = sphi 0, %s91
      %s92 = sphi 0, %s89
      %s93 = sphi 0, %s92
      %s109 = sphi 0, %s93
    $region4: #{tpu_custom_call.1} parent=1 // loop_header_branch
      %14 = sbr.rel (%p12) target = $region8
    $region5: #{tpu_custom_call.1} parent=1 // loop_body
      %s16 = ssub.s32 %s11, 1
      %s17 = ssub.s32 %s11, 2
      %s18 = sadd.s32 %s11, 1
      %s20 = sadd.s32 %s19, 1
      %p23 = scmp.eq.s32.totalorder %s11, 3
      %p24 = scmp.ne.s32.totalorder %s19, %s21
      %p25 = scmp.eq.s32.totalorder %s11, 0
      %p26 = por %p24, %p25
      %p27 = scmp.ne.s32.totalorder %s19, %s21
      %p28 = scmp.eq.s32.totalorder %s16, 3
      %p29 = por %p27, %p28
      %p30 = scmp.ne.s32.totalorder %s21, %s22
      %p31 = scmp.eq.s32.totalorder %s16, 0
      %p32 = por %p30, %p31
      %p33 = scmp.ne.s32.totalorder %s21, %s22
      %p34 = scmp.eq.s32.totalorder %s17, 3
      %p35 = por %p33, %p34
      %p37 = scmp.ne.s32.totalorder %s22, %s36
      %p38 = scmp.eq.s32.totalorder %s17, 0
      %p39 = por %p37, %p38
      %s41 = sadd.s32 %s40, 1
      %p44 = scmp.eq.s32.totalorder %s11, 3
      %p45 = scmp.ne.s32.totalorder %s40, %s42
      %p46 = scmp.eq.s32.totalorder %s11, 0
      %p47 = por %p45, %p46
      %p48 = scmp.ne.s32.totalorder %s40, %s42
      %p49 = scmp.eq.s32.totalorder %s16, 3
      %p50 = por %p48, %p49
      %p51 = scmp.ne.s32.totalorder %s42, %s43
      %p52 = scmp.eq.s32.totalorder %s16, 0
      %p53 = por %p51, %p52
      %p54 = scmp.ne.s32.totalorder %s42, %s43
      %p55 = scmp.eq.s32.totalorder %s17, 3
      %p56 = por %p54, %p55
      %p58 = scmp.ne.s32.totalorder %s43, %s57
      %p59 = scmp.eq.s32.totalorder %s17, 0
      %p60 = por %p58, %p59
      %s61 = ssub.s32 %s11, %s18
      %p62 = scmp.eq.s32.totalorder %s61, 0
      %s64 = sadd.s32 %s63, 1
      %s65 = scalar_select %p62, %s63, %s64
      %p68 = pneg %p62
      %p69 = scmp.eq.s32.totalorder %s11, 3
      %p70 = por %p68, %p69
      %p71 = scmp.ne.s32.totalorder %s63, %s66
      %p72 = scmp.eq.s32.totalorder %s11, 0
      %p73 = por %p71, %p72
      %p74 = scmp.ne.s32.totalorder %s63, %s66
      %p75 = scmp.eq.s32.totalorder %s16, 3
      %p76 = por %p74, %p75
      %p77 = scmp.ne.s32.totalorder %s66, %s67
      %p78 = scmp.eq.s32.totalorder %s16, 0
      %p79 = por %p77, %p78
      %p80 = scmp.ne.s32.totalorder %s66, %s67
      %p81 = scmp.eq.s32.totalorder %s17, 3
      %p82 = por %p80, %p81
      %p84 = scmp.ne.s32.totalorder %s67, %s83
      %p85 = scmp.eq.s32.totalorder %s17, 0
      %p86 = por %p84, %p85
      %s87 = ssub.s32 %s11, %s18
      %p88 = scmp.eq.s32.totalorder %s87, 0
      %s90 = sadd.s32 %s89, 1
      %s91 = scalar_select %p88, %s89, %s90
      %p94 = pneg %p88
      %p95 = scmp.eq.s32.totalorder %s11, 3
      %p96 = por %p94, %p95
      %p97 = scmp.ne.s32.totalorder %s89, %s92
      %p98 = scmp.eq.s32.totalorder %s11, 0
      %p99 = por %p97, %p98
      %p100 = scmp.ne.s32.totalorder %s89, %s92
      %p101 = scmp.eq.s32.totalorder %s16, 3
      %p102 = por %p100, %p101
      %p103 = scmp.ne.s32.totalorder %s92, %s93
      %p104 = scmp.eq.s32.totalorder %s16, 0
      %p105 = por %p103, %p104
      %p106 = scmp.ne.s32.totalorder %s92, %s93
      %p107 = scmp.eq.s32.totalorder %s17, 3
      %p108 = por %p106, %p107
      %p110 = scmp.ne.s32.totalorder %s93, %s109
      %p111 = scmp.eq.s32.totalorder %s17, 0
      %p112 = por %p110, %p111
      %p113 = scmp.le.s32.totalorder 1, %s11
      %p114 = scmp.lt.s32.totalorder %s11, 5
      %p115 = pnand %p113, %p114
      %p116 = pneg %p115
      // Predicated region
      $region9: #{tpu_custom_call.1} parent=5 // pred_check
        _
      $region10: #{tpu_custom_call.1} parent=5 // pred_check_branch
        %118 = sbr.rel (%p115) target = $region12
      $region11: #{tpu_custom_call.1} parent=5 // pred_region
        %s119 = ssub.s32 %s11, 1
        // Predicated region
        $region13: #{tpu_custom_call.1} parent=11 // pred_check
          %p120 = pneg %p32
        $region14: #{tpu_custom_call.1} parent=11 // pred_check_branch
          %122 = sbr.rel (%p120) target = $region16
        $region15: #{tpu_custom_call.1} parent=11 // pred_region
          %124 = vsyncadd [#allocation3], 0
          %s125 = sshll.u32 %s0, 4
          %s126 = int_to_ptr.hbm [resolvable:$true] %s125
          %s127 = sshll.u32 [#allocation2], 4
          %s128 = int_to_ptr.vmem [resolvable:$true] %s127
          %133 = dma.hbm_to_vmem [thread:$0]  %s126, 256, %s128, [#allocation3], 128, 128, 8
        $region16: #{tpu_custom_call.1} parent=11 // pred_fallthru
          _
        // Predicated region
        $region17: #{tpu_custom_call.1} parent=11 // pred_check
          %p134 = pneg %p53
        $region18: #{tpu_custom_call.1} parent=11 // pred_check_branch
          %136 = sbr.rel (%p134) target = $region20
        $region19: #{tpu_custom_call.1} parent=11 // pred_region
          %138 = vsyncadd [#allocation5], 0
          %s139 = sshll.u32 %s1, 4
          %s140 = int_to_ptr.hbm [resolvable:$true] %s139
          %s141 = sshll.u32 [#allocation4], 4
          %s142 = int_to_ptr.vmem [resolvable:$true] %s141
          %147 = dma.hbm_to_vmem [thread:$0]  %s140, 256, %s142, [#allocation5], 128, 128, 8
        $region20: #{tpu_custom_call.1} parent=11 // pred_fallthru
          _
      $region12: #{tpu_custom_call.1} parent=5 // pred_fallthru
        _
      %p148 = scmp.lt.s32.totalorder %s11, 4
      // Predicated region
      $region21: #{tpu_custom_call.1} parent=5 // pred_check
        %p149 = pneg %p148
      $region22: #{tpu_custom_call.1} parent=5 // pred_check_branch
        %151 = sbr.rel (%p149) target = $region24
      $region23: #{tpu_custom_call.1} parent=5 // pred_region
        // Predicated region
        $region25: #{tpu_custom_call.1} parent=23 // pred_check
          %p152 = pneg %p73
        $region26: #{tpu_custom_call.1} parent=23 // pred_check_branch
          %154 = sbr.rel (%p152) target = $region28
        $region27: #{tpu_custom_call.1} parent=23 // pred_region
          %s155 = sand.u32 %s11, 1
          %s156 = scalar_lea.sflag [#allocation3], %s155
          %s157 = sand.u32 %s63, 1
          %s158 = smul.addr %s157, 16
          %s159 = scalar_lea.vmem [#allocation6], %s158
          %161 = vsyncadd %s156, 0
          %s162 = smul.addr %s11, 2
          %s163 = smul.addr %s162, 8
          %s164 = scalar_lea.hbm %s2, %s163
          %s165 = sshll.u32 %s164, 4
          %s166 = int_to_ptr.hbm [resolvable:$true] %s165
          %s167 = sshll.u32 %s159, 4
          %s168 = int_to_ptr.vmem [resolvable:$true] %s167
          %173 = dma.hbm_to_vmem [thread:$0]  %s166, 256, %s168, %s156, 128, 128, 8
        $region28: #{tpu_custom_call.1} parent=23 // pred_fallthru
          _
      $region24: #{tpu_custom_call.1} parent=5 // pred_fallthru
        _
      %p174 = scmp.le.s32.totalorder 1, %s11
      %p175 = scmp.lt.s32.totalorder %s11, 5
      %p176 = pnand %p174, %p175
      %p177 = pneg %p176
      // Predicated region
      $region29: #{tpu_custom_call.1} parent=5 // pred_check
        _
      $region30: #{tpu_custom_call.1} parent=5 // pred_check_branch
        %179 = sbr.rel (%p176) target = $region32
      $region31: #{tpu_custom_call.1} parent=5 // pred_region
        %s180 = ssub.s32 %s11, 1
        // Predicated region
        $region33: #{tpu_custom_call.1} parent=31 // pred_check
          %p181 = pneg %p32
        $region34: #{tpu_custom_call.1} parent=31 // pred_check_branch
          %183 = sbr.rel (%p181) target = $region36
        $region35: #{tpu_custom_call.1} parent=31 // pred_region
          %185 = dma.done [#allocation3], 256
        $region36: #{tpu_custom_call.1} parent=31 // pred_fallthru
          _
        // Predicated region
        $region37: #{tpu_custom_call.1} parent=31 // pred_check
          %p186 = pneg %p53
        $region38: #{tpu_custom_call.1} parent=31 // pred_check_branch
          %188 = sbr.rel (%p186) target = $region40
        $region39: #{tpu_custom_call.1} parent=31 // pred_region
          %190 = dma.done [#allocation5], 256
        $region40: #{tpu_custom_call.1} parent=31 // pred_fallthru
          _
        %s191 = sand.u32 %s16, 1
        %s192 = scalar_lea.sflag [#allocation3], %s191
        %s193 = sand.u32 %s66, 1
        %s194 = smul.addr %s193, 16
        %s195 = scalar_lea.vmem [#allocation6], %s194
        // Predicated region
        $region41: #{tpu_custom_call.1} parent=31 // pred_check
          %p196 = pneg %p79
        $region42: #{tpu_custom_call.1} parent=31 // pred_check_branch
          %198 = sbr.rel (%p196) target = $region44
        $region43: #{tpu_custom_call.1} parent=31 // pred_region
          %200 = dma.done %s192, 256
        $region44: #{tpu_custom_call.1} parent=31 // pred_fallthru
          _
        %p201 = pneg %p32
        %p202 = pneg %p29
        %p203 = pneg %p53
        %p204 = pneg %p50
        %s205 = sand.u32 %s16, 1
        %s206 = scalar_lea.sflag [#allocation3], %s205
        %s207 = sand.u32 %s66, 1
        %s208 = smul.addr %s207, 16
        %s209 = scalar_lea.vmem [#allocation6], %s208
        %p210 = pneg %p79
        %p211 = pneg %p76
        %p212 = pneg %p105
        %p213 = pneg %p102
        %p214 = scmp.lt.s32.totalorder %s16, 3
        %s215 = scalar_select %p214, %s16, 3
        %s216 = smul.addr %s215, 2
        %s217 = smul.addr %s216, 8
        %s218 = scalar_lea.vmem %s3, %s217
        %p219 = scmp.lt.s32.totalorder %s16, 3
        %s220 = scalar_select %p219, %s16, 3
        %s221 = smul.addr %s220, 2
        %s222 = smul.addr %s221, 8
        %s223 = scalar_lea.vmem %s3, %s222
        %v224 = vld [vmem:[%s195] sm:$0xff]
        %v225 = vld [vmem:[%s195 + $0x8] sm:$0xff]
        %v226 = vld [vmem:[#allocation2] sm:$0xff]
        %v227 = vld [vmem:[#allocation2 + $0x8] sm:$0xf]
        %v228 = vld [vmem:[#allocation4] sm:$0xff]
        %v229 = vld [vmem:[#allocation4 + $0x8] sm:$0xff]
        %vm230 = vcmask 130048
        %v232 = vsel %vm230, %v224, 0
        %v235 = vsel %vm230, %v225, 0
        %237 = vmatpush.msra.mxu0 0.0
        %238 = vmatpush.msra.mxu0 0.0
        %239 = vmatpush.msra.mxu0 0.0
        %240 = vmatpush.msra.mxu0 0.0
        %241 = vmatpush.msra.mxu0 0.0
        %242 = vmatpush.msra.mxu0 0.0
        %243 = vmatpush.msra.mxu0 0.0
        %244 = vmatpush.msra.mxu0 0.0
        %245 = vmatpush.msra.mxu0 0.0
        %246 = vmatpush.msra.mxu0 0.0
        %247 = vmatpush.msra.mxu0 0.0
        %248 = vmatpush.msra.mxu0 0.0
        %249 = vmatpush.msra.mxu0 0.0
        %250 = vmatpush.msra.mxu0 0.0
        %251 = vmatpush.msra.mxu0 %v229
        %252 = vmatpush.msra.mxu0 %v228
        %253 = vmatmul.f32.gmra.mxu0 %v232
        %v254 = vpop.f32.mrf.mxu0
        %v255 = vadd.f32 0.0, %v254
        %256 = vmatmul.f32.gmra.mxu0 %v235
        %v257 = vpop.f32.mrf.mxu0
        %v258 = vadd.f32 0.0, %v257
        %259 = vdwg.mxu0
        %v261 = vsel %vm230, %v226, 0
        %v264 = vsel %vm230, %v227, 0
        %266 = vmatpush.msra.mxu0 0.0
        %267 = vmatpush.msra.mxu0 0.0
        %268 = vmatpush.msra.mxu0 0.0
        %269 = vmatpush.msra.mxu0 0.0
        %270 = vmatpush.msra.mxu0 0.0
        %271 = vmatpush.msra.mxu0 0.0
        %272 = vmatpush.msra.mxu0 0.0
        %273 = vmatpush.msra.mxu0 0.0
        %274 = vmatpush.msra.mxu0 0.0
        %275 = vmatpush.msra.mxu0 0.0
        %276 = vmatpush.msra.mxu0 0.0
        %277 = vmatpush.msra.mxu0 0.0
        %278 = vmatpush.msra.mxu0 0.0
        %279 = vmatpush.msra.mxu0 0.0
        %280 = vmatpush.msra.mxu0 %v258
        %281 = vmatpush.msra.mxu0 %v255
        %282 = vmatmul.f32.gmra.mxu0 %v261
        %v283 = vpop.f32.mrf.mxu0
        %v284 = vadd.f32 0.0, %v283
        %285 = vmatmul.f32.gmra.mxu0 %v264
        %v286 = vpop.f32.mrf.mxu0
        %v287 = vadd.f32 0.0, %v286
        %288 = vdwg.mxu0
        %v289 = vlaneseq
        %v290 = vshrl.u32 %v289, 7
        %v291 = vadd.s32 %v290, 8
        %v292 = vlaneseq
        %v293 = vand.u32 %v292, 127
        %vm294 = vcmp.ge.s32.totalorder %v290, 1
        %vm295 = vcmp.ge.s32.totalorder %v291, 1
        %vm296 = vcmp.lt.s32.totalorder %v290, 11
        %vm297 = vcmp.lt.s32.totalorder %v291, 11
        %vm298 = vmand %vm294, %vm296
        %vm299 = vmand %vm295, %vm297
        %vm300 = vcmp.ge.s32.totalorder %v293, 0
        %vm301 = vmand %vm298, %vm300
        %vm302 = vmand %vm299, %vm300
        %vm303 = vcmp.lt.s32.totalorder %v293, 10
        %vm304 = vmand %vm301, %vm303
        %vm305 = vmand %vm302, %vm303
        %v306 = vsel %vm304, %v284, 0.5
        %v307 = vsel %vm305, %v287, 0.5
        %vm308 = vcmask 80896
        %309 = vst.msk [vmem:[%s223] sm:$0xff] %vm308, %v306
        %vm310 = vcmask 76800
        %311 = vst.msk [vmem:[%s223 + $0x8] sm:$0xf] %vm310, %v307
        %p312 = scmp.lt.s32.totalorder %s16, 3
        %s313 = scalar_select %p312, %s16, 3
        %s314 = smul.addr %s313, 2
        %s315 = smul.addr %s314, 8
        %s316 = scalar_lea.vmem %s3, %s315
        // Predicated region
        $region45: #{tpu_custom_call.1} parent=31 // pred_check
          %p317 = pneg %p102
        $region46: #{tpu_custom_call.1} parent=31 // pred_check_branch
          %319 = sbr.rel (%p317) target = $region48
        $region47: #{tpu_custom_call.1} parent=31 // pred_region
          _
        $region48: #{tpu_custom_call.1} parent=31 // pred_fallthru
          _
      $region32: #{tpu_custom_call.1} parent=5 // pred_fallthru
        _
      %p320 = scmp.le.s32.totalorder 2, %s11
      // Predicated region
      $region49: #{tpu_custom_call.1} parent=5 // pred_check
        %p321 = pneg %p320
      $region50: #{tpu_custom_call.1} parent=5 // pred_check_branch
        %323 = sbr.rel (%p321) target = $region52
      $region51: #{tpu_custom_call.1} parent=5 // pred_region
        %s324 = ssub.s32 %s11, 2
        // Predicated region
        $region53: #{tpu_custom_call.1} parent=51 // pred_check
          %p325 = pneg %p108
        $region54: #{tpu_custom_call.1} parent=51 // pred_check_branch
          %327 = sbr.rel (%p325) target = $region56
        $region55: #{tpu_custom_call.1} parent=51 // pred_region
          %p328 = scmp.lt.s32.totalorder %s17, 3
          %s329 = scalar_select %p328, %s17, 3
          %s330 = smul.addr %s329, 2
          %s331 = smul.addr %s330, 8
          %s332 = scalar_lea.vmem %s3, %s331
        $region56: #{tpu_custom_call.1} parent=51 // pred_fallthru
          _
      $region52: #{tpu_custom_call.1} parent=5 // pred_fallthru
        _
    $region6: #{tpu_custom_call.1} parent=1 // loop_footer
      %s15 = sadd.s32 1, %s11
    $region7: #{tpu_custom_call.1} parent=1 // loop_footer_branch
      %10 = sbr.rel target = $region3
    $region8: #{tpu_custom_call.1} parent=1 // loop_exit
      _
    %333 = vsyncpa [#allocation3], 1
    %s334 = scalar_lea.sflag [#allocation3], 1
    %335 = vsyncpa %s334, 1
    %336 = vsyncpa [#allocation5], 1

</llo_original>
